<compile_context>
chip_gen: v6e
topology: v6e:2x2x1
jax: 0.10.0
libtpu: 0.0.40
codegen_flags: <defaults>
</compile_context>

<pallas_src>
import numpy as np
import jax
import jax.numpy as jnp
from jax.experimental import pallas as pl
from jax.experimental.pallas import tpu as pltpu

NEG = -1.0e30          # -inf stand-in that is safe under exp/log arithmetic
N_BLK = 8              # batch rows per block (one sublane group)


def _ctc_kernel(lp_ref, skip_ref, final_ref, vlen_ref, out_ref, alpha_ref):
    """One (batch_block, time_block) grid step of the CTC alpha recursion.

    lp_ref:    (T_TILE, N_BLK, S_pad) extended-label emission log-probs
    skip_ref:  (N_BLK, S_pad) additive mask, 0 where the s-2 transition is legal
    final_ref: (N_BLK, S_pad) additive mask, 0 at the two terminal states
    vlen_ref:  (N_BLK, 1) int32 input lengths
    out_ref:   (N_BLK, 1) per-sequence negative log-likelihood
    alpha_ref: (N_BLK, S_pad) f32 scratch, persists across time blocks
    """
    t_tile, n_blk, s_pad = lp_ref.shape
    t_blk = pl.program_id(1)

    # ---- t == 0: only extended states s in {0, 1} are reachable ----
    @pl.when(t_blk == 0)
    def _init():
        lane0 = jax.lax.broadcasted_iota(jnp.int32, (n_blk, s_pad), 1)
        alpha_ref[...] = jnp.where(lane0 < 2, lp_ref[0], NEG)

    # Loop-invariant operands (hoisted out of the DP loop).
    skip_add = skip_ref[...]                       # NEG where the s-2 skip is illegal (incl. s<2 wrap)
    vlen = vlen_ref[...]                           # (n_blk, 1) int32
    lane = jax.lax.broadcasted_iota(jnp.int32, (n_blk, s_pad), 1)
    wrap1 = jnp.where(lane < 1, NEG, 0.0).astype(jnp.float32)  # kill lane-0 wraparound of roll(.,1)
    t0 = t_blk * t_tile

    def step(i, carry):
        t = t0 + i                                             # global time index
        a0 = alpha_ref[...]                                    # alpha_{t-1}(s), single load
        a1 = pltpu.roll(a0, shift=1, axis=1) + wrap1           # alpha_{t-1}(s-1) via XLU
        a2 = pltpu.roll(a0, shift=2, axis=1) + skip_add        # alpha_{t-1}(s-2), masked where illegal
        m = jnp.maximum(jnp.maximum(a0, a1), a2)
        lse = m + jnp.log(jnp.exp(a0 - m) + jnp.exp(a1 - m) + jnp.exp(a2 - m))
        new_alpha = jnp.maximum(lse + lp_ref[i], NEG)          # clamp: dead states don't drift with T
        upd = jnp.logical_and(t >= 1, t < vlen)                # skip t=0 (init) and freeze past vid_len
        alpha_ref[...] = jnp.where(upd, new_alpha, a0)
        return carry

    jax.lax.fori_loop(0, t_tile, step, 0)

    # ---- last time block: logsumexp over the two terminal extended states ----
    @pl.when(t_blk == pl.num_programs(1) - 1)
    def _fin():
        masked = alpha_ref[...] + final_ref[...]
        mmax = jnp.max(masked, axis=1, keepdims=True)
        lse = mmax + jnp.log(jnp.sum(jnp.exp(masked - mmax), axis=1, keepdims=True))
        out_ref[...] = -lse


def weighted_ctc_loss(y, txt, vid_len, txt_len, *, blank_weight=0.5, blank_index=0):
    T, N, C = y.shape
    L_max = txt.shape[1]

    S_ext = 2 * L_max + 1
    S_pad = ((S_ext + 127) // 128) * 128            # extended-label axis -> lane multiple
    N_pad = ((N + N_BLK - 1) // N_BLK) * N_BLK      # batch -> sublane multiple

    # Time tile: <= 128 steps and <= ~4 MiB per lp buffer so it double-buffers in VMEM
    t_budget = max(8, (4 << 20) // (N_BLK * S_pad * 4))
    T_TILE = int(min(T, 128, t_budget))
    T_pad = ((T + T_TILE - 1) // T_TILE) * T_TILE

    # ---- pad batch/time; padded rows get length 0 and are dropped from the mean ----
    y_p = jnp.pad(y.astype(jnp.float32), ((0, T_pad - T), (0, N_pad - N), (0, 0)))
    txt_p = jnp.pad(txt.astype(jnp.int32), ((0, N_pad - N), (0, 0)),
                    constant_values=blank_index)
    vlen_p = jnp.pad(vid_len.astype(jnp.int32), (0, N_pad - N))
    tlen_p = jnp.pad(txt_len.astype(jnp.int32), (0, N_pad - N))

    # ---- extended label sequence: blank, l1, blank, l2, ..., blank ----
    lab_ext = jnp.full((N_pad, S_pad), blank_index, dtype=jnp.int32)
    lab_ext = lab_ext.at[:, 1:2 * L_max:2].set(txt_p)
    s_idx = jnp.arange(S_pad, dtype=jnp.int32)[None, :]
    Ln = tlen_p[:, None]
    valid_s = s_idx < (2 * Ln + 1)

    # Emission gather as one-hot matmul (MXU) instead of take_along_axis; exact at HIGHEST.
    onehot = jax.nn.one_hot(lab_ext, C, dtype=jnp.float32)           # (N_pad, S_pad, C)
    lp_ext = jnp.einsum('tnc,nsc->tns', y_p, onehot,
                        precision=jax.lax.Precision.HIGHEST)          # (T_pad, N_pad, S_pad)
    lp_ext = jnp.where(valid_s[None], lp_ext, NEG)

    # Additive masks: 0.0 where the transition / terminal state is legal, NEG otherwise.
    lab_m2 = jnp.concatenate(
        [jnp.full((N_pad, 2), blank_index, jnp.int32), lab_ext[:, :-2]], axis=1)
    skip_ok = (lab_ext != blank_index) & (lab_ext != lab_m2) & (s_idx >= 2) & valid_s
    skip_add = jnp.where(skip_ok, 0.0, NEG).astype(jnp.float32)
    final_ok = (s_idx == 2 * Ln) | ((s_idx == 2 * Ln - 1) & (Ln >= 1))
    final_add = jnp.where(final_ok, 0.0, NEG).astype(jnp.float32)

    vlen2 = vlen_p[:, None]                                           # (N_pad, 1) int32

    grid = (N_pad // N_BLK, T_pad // T_TILE)
    nll = pl.pallas_call(
        _ctc_kernel,
        out_shape=jax.ShapeDtypeStruct((N_pad, 1), jnp.float32),
        grid_spec=pltpu.PrefetchScalarGridSpec(
            num_scalar_prefetch=0,
            grid=grid,
            in_specs=[
                pl.BlockSpec((T_TILE, N_BLK, S_pad), lambda b, t: (t, b, 0)),
                pl.BlockSpec((N_BLK, S_pad), lambda b, t: (b, 0)),
                pl.BlockSpec((N_BLK, S_pad), lambda b, t: (b, 0)),
                pl.BlockSpec((N_BLK, 1), lambda b, t: (b, 0)),
            ],
            out_specs=pl.BlockSpec((N_BLK, 1), lambda b, t: (b, 0)),
            scratch_shapes=[pltpu.VMEM((N_BLK, S_pad), jnp.float32)],
        ),
        compiler_params=pltpu.CompilerParams(
            dimension_semantics=("parallel", "arbitrary")),
    )(lp_ext, skip_add, final_add, vlen2)

    # ---- trivial epilogue in XLA: length-norm (clamped), batch mean, blank weighting ----
    loss_n = nll[:N, 0]
    tlen_c = jnp.maximum(txt_len.astype(jnp.float32), 1.0)   # PyTorch divides by max(L, 1)
    ctc = jnp.mean(loss_n / tlen_c)
    mask_mean = jnp.mean((txt != blank_index).astype(jnp.float32))
    return ctc * (blank_weight + (1.0 - blank_weight) * mask_mean)


def _reference(y, txt, vid_len, txt_len, blank_weight=0.5, blank=0):
    """Pure-numpy replica of nn.CTCLoss(blank=0, reduction='mean') + blank weighting."""
    y = np.asarray(y, dtype=np.float64)
    txt = np.asarray(txt)
    T, N, C = y.shape
    losses = []
    for n in range(N):
        L = int(txt_len[n]); Tn = int(vid_len[n])
        lab = [blank]
        for i in range(L):
            lab += [int(txt[n, i]), blank]
        S = len(lab)
        alpha = np.full(S, -np.inf)
        alpha[0] = y[0, n, lab[0]]
        if S > 1:
            alpha[1] = y[0, n, lab[1]]
        for t in range(1, Tn):
            new = np.full(S, -np.inf)
            for s in range(S):
                cands = [alpha[s]]
                if s >= 1:
                    cands.append(alpha[s - 1])
                if s >= 2 and lab[s] != blank and lab[s] != lab[s - 2]:
                    cands.append(alpha[s - 2])
                new[s] = np.logaddexp.reduce(cands) + y[t, n, lab[s]]
            alpha = new
        cands = [alpha[S - 1]] + ([alpha[S - 2]] if S >= 2 else [])
        loss = -np.logaddexp.reduce(cands)
        losses.append(loss / max(L, 1))
    ctc = float(np.mean(losses))
    mask_mean = float(np.mean(txt != blank))
    return ctc * (blank_weight + (1.0 - blank_weight) * mask_mean)


if __name__ == "__main__":
    key = jax.random.PRNGKey(0)
    T, N, C, L_max = 16, 2, 8, 5
    k1, k2 = jax.random.split(key)
    logits = jax.random.normal(k1, (T, N, C), dtype=jnp.float32)
    y = jax.nn.log_softmax(logits, axis=-1)                 # log-probs, as CTCLoss expects
    txt = jax.random.randint(k2, (N, L_max), 1, C, dtype=jnp.int32)  # labels never == blank
    vid_len = jnp.array([T, T - 4], dtype=jnp.int32)
    txt_len = jnp.array([L_max, 3], dtype=jnp.int32)

    out = weighted_ctc_loss(y, txt, vid_len, txt_len, blank_weight=0.5, blank_index=0)
    out = jax.block_until_ready(out)

    ref = _reference(np.asarray(y), np.asarray(txt),
                     np.asarray(vid_len), np.asarray(txt_len))
    assert np.isfinite(float(out)), "kernel produced non-finite loss"
    np.testing.assert_allclose(float(out), ref, rtol=1e-4, atol=1e-4)
    print("KERNEL_OK")
</pallas_src>

<mosaic_0001>
module attributes {stable_mosaic.version = 11 : i64} {
  func.func @_ctc_kernel(%arg0: i32, %arg1: i32, %arg2: memref<16x8x128xf32, #tpu.memory_space<vmem>>, %arg3: memref<8x128xf32, #tpu.memory_space<vmem>>, %arg4: memref<8x128xf32, #tpu.memory_space<vmem>>, %arg5: memref<8x1xi32, #tpu.memory_space<vmem>>, %arg6: memref<8x1xf32, #tpu.memory_space<vmem>>, %arg7: memref<8x128xf32, #tpu.memory_space<vmem>>) attributes {dimension_semantics = [#tpu.dimension_semantics<parallel>, #tpu.dimension_semantics<arbitrary>], iteration_bounds = array<i64: 1, 1>, scalar_prefetch = 0 : i64, scratch_operands = 1 : i64, tpu.core_type = #tpu.core_type<tc>, window_params = [{transform_indices = @transform_0, window_bounds = array<i64: 16, 8, 128>}, {transform_indices = @transform_1, window_bounds = array<i64: 8, 128>}, {transform_indices = @transform_2, window_bounds = array<i64: 8, 128>}, {transform_indices = @transform_3, window_bounds = array<i64: 8, 1>}, {transform_indices = @transform_4, window_bounds = array<i64: 8, 1>}]} {
    %c0_i32 = arith.constant 0 : i32
    %0 = arith.cmpi eq, %arg1, %c0_i32 : i32
    %1 = arith.extui %0 : i1 to i32
    %c0_i32_0 = arith.constant 0 : i32
    %2 = arith.cmpi ne, %1, %c0_i32_0 : i32
    scf.if %2 {
      %16 = tpu.iota {dimensions = array<i32: 1>} : vector<8x128xi32>
      %c2_i32 = arith.constant 2 : i32
      %17 = vector.broadcast %c2_i32 : i32 to vector<8x128xi32>
      %18 = arith.cmpi slt, %16, %17 : vector<8x128xi32>
      %c0_11 = arith.constant 0 : index
      %c0_12 = arith.constant 0 : index
      %c0_13 = arith.constant 0 : index
      %19 = vector.load %arg2[%c0_11, %c0_12, %c0_13] : memref<16x8x128xf32, #tpu.memory_space<vmem>>, vector<1x8x128xf32>
      %20 = vector.shape_cast %19 : vector<1x8x128xf32> to vector<8x128xf32>
      %cst_14 = arith.constant -1.000000e+30 : f32
      %21 = vector.broadcast %cst_14 : f32 to vector<8x128xf32>
      %22 = arith.select %18, %20, %21 : vector<8x128xi1>, vector<8x128xf32>
      %c0_15 = arith.constant 0 : index
      %c0_16 = arith.constant 0 : index
      %23 = vector.load %arg7[%c0_15, %c0_16] : memref<8x128xf32, #tpu.memory_space<vmem>>, vector<8x128xf32>
      tpu.vector_store %arg7[%c0_15, %c0_16], %22 {strides = array<i32>} : memref<8x128xf32, #tpu.memory_space<vmem>>, vector<8x128xf32>,
    } else {
    }
    %c0 = arith.constant 0 : index
    %c0_1 = arith.constant 0 : index
    %3 = vector.load %arg3[%c0, %c0_1] : memref<8x128xf32, #tpu.memory_space<vmem>>, vector<8x128xf32>
    %c0_2 = arith.constant 0 : index
    %c0_3 = arith.constant 0 : index
    %4 = vector.load %arg5[%c0_2, %c0_3] : memref<8x1xi32, #tpu.memory_space<vmem>>, vector<8x1xi32>
    %5 = tpu.iota {dimensions = array<i32: 1>} : vector<8x128xi32>
    %c1_i32 = arith.constant 1 : i32
    %6 = vector.broadcast %c1_i32 : i32 to vector<8x128xi32>
    %7 = arith.cmpi slt, %5, %6 : vector<8x128xi32>
    %cst = arith.constant -1.000000e+30 : f32
    %cst_4 = arith.constant 0.000000e+00 : f32
    %8 = vector.broadcast %cst : f32 to vector<8x128xf32>
    %9 = vector.broadcast %cst_4 : f32 to vector<8x128xf32>
    %10 = arith.select %7, %8, %9 : vector<8x128xi1>, vector<8x128xf32>
    %c16_i32 = arith.constant 16 : i32
    %11 = arith.muli %arg1, %c16_i32 : i32
    %c0_i32_5 = arith.constant 0 : i32
    %c16_i32_6 = arith.constant 16 : i32
    %12 = arith.addi %c0_i32_5, %c16_i32_6 : i32
    %c1_i32_7 = arith.constant 1 : i32
    scf.for %arg8 = %c0_i32_5 to %12 step %c1_i32_7  : i32 {
      %16 = arith.addi %11, %arg8 : i32
      %c0_11 = arith.constant 0 : index
      %c0_12 = arith.constant 0 : index
      %17 = vector.load %arg7[%c0_11, %c0_12] : memref<8x128xf32, #tpu.memory_space<vmem>>, vector<8x128xf32>
      %c1_i32_13 = arith.constant 1 : i32
      %18 = tpu.dynamic_rotate %17 by %c1_i32_13 dim 1 : vector<8x128xf32>, i32 -> vector<8x128xf32>
      %19 = arith.addf %18, %10 : vector<8x128xf32>
      %c2_i32 = arith.constant 2 : i32
      %20 = tpu.dynamic_rotate %17 by %c2_i32 dim 1 : vector<8x128xf32>, i32 -> vector<8x128xf32>
      %21 = arith.addf %20, %3 : vector<8x128xf32>
      %22 = arith.maximumf %17, %19 : vector<8x128xf32>
      %23 = arith.maximumf %22, %21 : vector<8x128xf32>
      %24 = arith.subf %17, %23 : vector<8x128xf32>
      %25 = math.exp %24 : vector<8x128xf32>
      %26 = arith.subf %19, %23 : vector<8x128xf32>
      %27 = math.exp %26 : vector<8x128xf32>
      %28 = arith.addf %25, %27 : vector<8x128xf32>
      %29 = arith.subf %21, %23 : vector<8x128xf32>
      %30 = math.exp %29 : vector<8x128xf32>
      %31 = arith.addf %28, %30 : vector<8x128xf32>
      %32 = math.log %31 : vector<8x128xf32>
      %33 = arith.addf %23, %32 : vector<8x128xf32>
      %34 = arith.index_cast %arg8 : i32 to index
      %c0_14 = arith.constant 0 : index
      %c0_15 = arith.constant 0 : index
      %35 = vector.load %arg2[%34, %c0_14, %c0_15] : memref<16x8x128xf32, #tpu.memory_space<vmem>>, vector<1x8x128xf32>
      %36 = vector.shape_cast %35 : vector<1x8x128xf32> to vector<8x128xf32>
      %37 = arith.addf %33, %36 : vector<8x128xf32>
      %cst_16 = arith.constant -1.000000e+30 : f32
      %38 = vector.broadcast %cst_16 : f32 to vector<8x128xf32>
      %39 = arith.maximumf %37, %38 : vector<8x128xf32>
      %c1_i32_17 = arith.constant 1 : i32
      %40 = arith.cmpi sge, %16, %c1_i32_17 : i32
      %41 = vector.broadcast %16 : i32 to vector<8x1xi32>
      %42 = arith.cmpi slt, %41, %4 : vector<8x1xi32>
      %43 = vector.broadcast %40 : i1 to vector<8x1xi1>
      %44 = arith.andi %43, %42 : vector<8x1xi1>
      %45 = vector.shape_cast %44 : vector<8x1xi1> to vector<8x1xi1>
      %46 = vector.broadcast %45 : vector<8x1xi1> to vector<8x128xi1>
      %47 = arith.select %46, %39, %17 : vector<8x128xi1>, vector<8x128xf32>
      %c0_18 = arith.constant 0 : index
      %c0_19 = arith.constant 0 : index
      %48 = vector.load %arg7[%c0_18, %c0_19] : memref<8x128xf32, #tpu.memory_space<vmem>>, vector<8x128xf32>
      tpu.vector_store %arg7[%c0_18, %c0_19], %47 {strides = array<i32>} : memref<8x128xf32, #tpu.memory_space<vmem>>, vector<8x128xf32>,
    }
    %c16_i32_8 = arith.constant 16 : i32
    %c0_i32_9 = arith.constant 0 : i32
    %13 = arith.cmpi eq, %arg1, %c0_i32_9 : i32
    %14 = arith.extui %13 : i1 to i32
    %c0_i32_10 = arith.constant 0 : i32
    %15 = arith.cmpi ne, %14, %c0_i32_10 : i32
    scf.if %15 {
      %c0_11 = arith.constant 0 : index
      %c0_12 = arith.constant 0 : index
      %16 = vector.load %arg7[%c0_11, %c0_12] : memref<8x128xf32, #tpu.memory_space<vmem>>, vector<8x128xf32>
      %c0_13 = arith.constant 0 : index
      %c0_14 = arith.constant 0 : index
      %17 = vector.load %arg4[%c0_13, %c0_14] : memref<8x128xf32, #tpu.memory_space<vmem>>, vector<8x128xf32>
      %18 = arith.addf %16, %17 : vector<8x128xf32>
      %cst_15 = arith.constant dense<0xFF800000> : vector<8xf32>
      %19 = vector.multi_reduction <maximumf>, %18, %cst_15 [1] : vector<8x128xf32> to vector<8xf32>
      %20 = vector.shape_cast %19 : vector<8xf32> to vector<8x1xf32>
      %21 = vector.broadcast %20 : vector<8x1xf32> to vector<8x128xf32>
      %22 = arith.subf %18, %21 : vector<8x128xf32>
      %23 = math.exp %22 : vector<8x128xf32>
      %cst_16 = arith.constant dense<0.000000e+00> : vector<8xf32>
      %24 = vector.multi_reduction <add>, %23, %cst_16 [1] : vector<8x128xf32> to vector<8xf32>
      %25 = vector.shape_cast %24 : vector<8xf32> to vector<8x1xf32>
      %26 = math.log %25 : vector<8x1xf32>
      %27 = arith.addf %20, %26 : vector<8x1xf32>
      %cst_17 = arith.constant 0.000000e+00 : f32
      %28 = vector.broadcast %cst_17 : f32 to vector<8x1xf32>
      %29 = arith.subf %28, %27 : vector<8x1xf32>
      %c0_18 = arith.constant 0 : index
      %c0_19 = arith.constant 0 : index
      %30 = vector.load %arg6[%c0_18, %c0_19] : memref<8x1xf32, #tpu.memory_space<vmem>>, vector<8x1xf32>
      tpu.vector_store %arg6[%c0_18, %c0_19], %29 {strides = array<i32>} : memref<8x1xf32, #tpu.memory_space<vmem>>, vector<8x1xf32>,
    } else {
    }
    return
  }
  func.func @transform_0(%arg0: i32, %arg1: i32) -> (i32, i32, i32) {
    %c0_i32 = arith.constant 0 : i32
    %c0_i32_0 = arith.constant 0 : i32
    return %arg1, %arg0, %c0_i32 : i32, i32, i32
  }
  func.func @transform_1(%arg0: i32, %arg1: i32) -> (i32, i32) {
    %c0_i32 = arith.constant 0 : i32
    %c0_i32_0 = arith.constant 0 : i32
    return %arg0, %c0_i32 : i32, i32
  }
  func.func @transform_2(%arg0: i32, %arg1: i32) -> (i32, i32) {
    %c0_i32 = arith.constant 0 : i32
    %c0_i32_0 = arith.constant 0 : i32
    return %arg0, %c0_i32 : i32, i32
  }
  func.func @transform_3(%arg0: i32, %arg1: i32) -> (i32, i32) {
    %c0_i32 = arith.constant 0 : i32
    %c0_i32_0 = arith.constant 0 : i32
    return %arg0, %c0_i32 : i32, i32
  }
  func.func @transform_4(%arg0: i32, %arg1: i32) -> (i32, i32) {
    %c0_i32 = arith.constant 0 : i32
    %c0_i32_0 = arith.constant 0 : i32
    return %arg0, %c0_i32 : i32, i32
  }
}

</mosaic_0001>

<llo_original>
// kernel: tpu_custom_call.1
$region0: #{tpu_custom_call.1}
  #allocation0 [shape = 'u32[]', space=smem, size = 0x4, offset = 0x4, fixed_abs, tag = 'smem constant byte address 0x4 - core index']
  #allocation1 [shape = 'u32[144,128]{1,0:T(1,128)}', space=vmem, size = 0x12000, scoped, tag = 'internal scratch']
  #allocation2 [shape = 'f32[8,128]{1,0:T(8,128)}', space=vmem, size = 0x1000, scoped, tag = 'scratch operand']
  %s0 = inlined_call_operand.hbm [shape: f32[16,8,128], index: 0, kind: input, shape index: {}]
  %s1 = inlined_call_operand.vmem [shape: f32[8,128], index: 1, kind: input, shape index: {}]
  %s2 = inlined_call_operand.hbm [shape: f32[8,128], index: 2, kind: input, shape index: {}]
  %s3 = inlined_call_operand.vmem [shape: s32[8,1], index: 3, kind: input, shape index: {}]
  %s4 = inlined_call_operand.vmem [shape: f32[8,1], index: 4, kind: output, shape index: {}]
  %s5 = sld [smem:[#allocation0]]
  $region49: #{tpu_custom_call.1} parent=0
    _
  %s7 = ssub.s32 1, %s5
  %s8 = scalar_select 0, %s7, %s5
  $region1: #{tpu_custom_call.1} parent=0
    #allocation3 [shape = 'u8[65536]{0}', space=vmem, size = 0x10000, scoped, tag = 'input window, operand 0, single buffered']
    #allocation4 [shape = 's32[1]{0}', space=sflag, size = 0x4, scoped, tag = 'scoped memory for tpu_custom_call.1']
    #allocation5 [shape = 'u8[4096]{0}', space=vmem, size = 0x1000, scoped, tag = 'input window, operand 2, single buffered']
    #allocation6 [shape = 's32[1]{0}', space=sflag, size = 0x4, scoped, tag = 'scoped memory for tpu_custom_call.1']
    %9 = vsyncpa [#allocation4], 0
    %10 = vsyncpa [#allocation6], 0
    // Predicated region
    $region2: #{tpu_custom_call.1} parent=1 // pred_check
      _
    $region3: #{tpu_custom_call.1} parent=1 // pred_check_branch
      %12 = sbr.rel (0) target = $region5
    $region4: #{tpu_custom_call.1} parent=1 // pred_region
      %s14 = ssub.s32 2048, 2048
      %15 = vsyncadd [#allocation4], %s14
      %s16 = sshll.u32 [#allocation3], 4
      %s17 = int_to_ptr.vmem [resolvable:$true] %s16
      %22 = dma.hbm_to_vmem [thread:$0]  %s0, 2048, %s17, [#allocation4], 128, 128, 8
    $region5: #{tpu_custom_call.1} parent=1 // pred_fallthru
      _
    // Predicated region
    $region6: #{tpu_custom_call.1} parent=1 // pred_check
      _
    $region7: #{tpu_custom_call.1} parent=1 // pred_check_branch
      %24 = sbr.rel (0) target = $region9
    $region8: #{tpu_custom_call.1} parent=1 // pred_region
      _
    $region9: #{tpu_custom_call.1} parent=1 // pred_fallthru
      _
    // Predicated region
    $region10: #{tpu_custom_call.1} parent=1 // pred_check
      _
    $region11: #{tpu_custom_call.1} parent=1 // pred_check_branch
      %26 = sbr.rel (0) target = $region13
    $region12: #{tpu_custom_call.1} parent=1 // pred_region
      %s28 = ssub.s32 128, 128
      %29 = vsyncadd [#allocation6], %s28
      %s31 = sshll.u32 [#allocation5], 4
      %s32 = int_to_ptr.vmem [resolvable:$true] %s31
      %34 = dma.hbm_to_vmem [thread:$0]  %s2, 128, %s32, [#allocation6]
    $region13: #{tpu_custom_call.1} parent=1 // pred_fallthru
      _
    // Predicated region
    $region14: #{tpu_custom_call.1} parent=1 // pred_check
      _
    $region15: #{tpu_custom_call.1} parent=1 // pred_check_branch
      %36 = sbr.rel (0) target = $region17
    $region16: #{tpu_custom_call.1} parent=1 // pred_region
      _
    $region17: #{tpu_custom_call.1} parent=1 // pred_fallthru
      _
    // Predicated region
    $region18: #{tpu_custom_call.1} parent=1 // pred_check
      _
    $region19: #{tpu_custom_call.1} parent=1 // pred_check_branch
      %38 = sbr.rel (0) target = $region21
    $region20: #{tpu_custom_call.1} parent=1 // pred_region
      %39 = dma.done [#allocation4], 2048
    $region21: #{tpu_custom_call.1} parent=1 // pred_fallthru
      _
    // Predicated region
    $region22: #{tpu_custom_call.1} parent=1 // pred_check
      _
    $region23: #{tpu_custom_call.1} parent=1 // pred_check_branch
      %41 = sbr.rel (0) target = $region25
    $region24: #{tpu_custom_call.1} parent=1 // pred_region
      %42 = dma.done [#allocation6], 128
    $region25: #{tpu_custom_call.1} parent=1 // pred_fallthru
      _
    %p43 = scmp.eq.s32.totalorder 0, 0
    // Predicated region
    $region26: #{tpu_custom_call.1} parent=1 // pred_check
      %p44 = pneg %p43
    $region27: #{tpu_custom_call.1} parent=1 // pred_check_branch
      %46 = sbr.rel (%p44) target = $region29
    $region28: #{tpu_custom_call.1} parent=1 // pred_region
      %v47 = vlaneseq
      %v48 = vand.u32 %v47, 127
      %vm49 = vcmp.lt.s32.totalorder %v48, 2
      %v50 = vld [vmem:[#allocation3] sm:$0xff]
      %v51 = vsel %vm49, %v50, -1e+30
      %52 = vst [vmem:[#allocation2] sm:$0xff] %v51
    $region29: #{tpu_custom_call.1} parent=1 // pred_fallthru
      _
    %v53 = vld [vmem:[%s1] sm:$0xff]
    %v54 = vld [vmem:[%s3] sm:$0xff]
    %v55 = vlaneseq
    %v56 = vand.u32 %v55, 127
    %vm57 = vcmp.lt.s32.totalorder %v56, 1
    %v58 = vsel %vm57, -1e+30, 0.0
    %s59 = smul.u32 0, 16
    loop: start=0, step=1, limit=16
    $region30: #{tpu_custom_call.1} parent=1 // loop_pre_header
      _
    $region31: #{tpu_custom_call.1} parent=1 // loop_header
      %s61 = sphi 0, %s65
      %p62 = scmp.ge.s32.totalorder %s61, 16
    $region32: #{tpu_custom_call.1} parent=1 // loop_header_branch
      %64 = sbr.rel (%p62) target = $region36
    $region33: #{tpu_custom_call.1} parent=1 // loop_body
      %s66 = sadd.s32 %s59, %s61
      %v67 = vld [vmem:[#allocation2] sm:$0xff]
      %68 = vrot.lane.b32.xlu0 %v67, 1
      %v69 = vpop.permute.xlu0 %68
      %v70 = vadd.f32 %v69, %v58
      %71 = vrot.lane.b32.xlu0 %v67, 2
      %v72 = vpop.permute.xlu0 %71
      %v73 = vadd.f32 %v72, %v53
      %v74 = vmax.f32 %v67, %v70
      %v75 = vmax.f32 %v74, %v73
      %v76 = vsub.f32 %v67, %v75
      %v77 = vmul.f32 %v76, 1.442695
      %v78 = vpow.pop %v77
      %v79 = vsub.f32 %v70, %v75
      %v80 = vmul.f32 %v79, 1.442695
      %v81 = vpow.pop %v80
      %v82 = vadd.f32 %v78, %v81
      %v83 = vsub.f32 %v73, %v75
      %v84 = vmul.f32 %v83, 1.442695
      %v85 = vpow.pop %v84
      %v86 = vadd.f32 %v82, %v85
      %v87 = vlog2.pop %v86
      %v88 = vmul.f32 %v87, 0.6931472
      %v89 = vadd.f32 %v75, %v88
      %s90 = smul.u32 %s61, 8
      %s91 = scalar_lea.vmem [#allocation3], %s90
      %v92 = vld [vmem:[%s91] sm:$0xff]
      %v93 = vadd.f32 %v89, %v92
      %v94 = vmax.f32 %v93, -1e+30
      %p95 = scmp.ge.s32.totalorder %s66, 1
      %v96 = vstv %s66
      %vm97 = vcmp.lt.s32.totalorder %v96, %v54
      %s98 = scalar_select %p95, 1, 0
      %v99 = vstv %s98
      %vm100 = vcmp.eq.s32.totalorder %v99, 1
      %vm101 = vmand %vm100, %vm97
      %v102 = vsel %vm101, 1, 0
      %103 = vset.pattern.permute.xlu0 0
      %104 = vperm.xlu0 %103, %v102
      %v105 = vpop.permute.xlu0 %104
      %vm106 = vcmp.eq.s32.totalorder %v105, 1
      %v107 = vsel %vm106, %v94, %v67
      %108 = vst [vmem:[#allocation2] sm:$0xff] %v107
    $region34: #{tpu_custom_call.1} parent=1 // loop_footer
      %s65 = sadd.s32 1, %s61
    $region35: #{tpu_custom_call.1} parent=1 // loop_footer_branch
      %60 = sbr.rel target = $region31
    $region36: #{tpu_custom_call.1} parent=1 // loop_exit
      _
    // Predicated region
    $region37: #{tpu_custom_call.1} parent=1 // pred_check
      %p109 = pneg %p43
    $region38: #{tpu_custom_call.1} parent=1 // pred_check_branch
      %111 = sbr.rel (%p109) target = $region40
    $region39: #{tpu_custom_call.1} parent=1 // pred_region
      %v112 = vld [vmem:[#allocation2] sm:$0xff]
      %v113 = vld [vmem:[#allocation5] sm:$0xff]
      %v114 = vadd.f32 %v112, %v113
      %115 = vmax.xlane.f32.xlu0 %v114
      %v116 = vpop.xlane.xlu0 %115
      %v117 = vsub.f32 %v114, %v116
      %v118 = vmul.f32 %v117, 1.442695
      %v119 = vpow.pop %v118
      %120 = vadd.xlane.f32.xlu0 %v119
      %v121 = vpop.xlane.xlu0 %120
      %v122 = vlog2.pop %v121
      %v123 = vmul.f32 %v122, 0.6931472
      %v124 = vadd.f32 %v116, %v123
      %v125 = vsub.f32 0.0, %v124
      %vm126 = vcmask 7168
      %127 = vst.msk [vmem:[%s4] sm:$0xff] %vm126, %v125
    $region40: #{tpu_custom_call.1} parent=1 // pred_fallthru
      _
    // Predicated region
    $region41: #{tpu_custom_call.1} parent=1 // pred_check
      _
    $region42: #{tpu_custom_call.1} parent=1 // pred_check_branch
      %129 = sbr.rel (0) target = $region44
    $region43: #{tpu_custom_call.1} parent=1 // pred_region
      _
    $region44: #{tpu_custom_call.1} parent=1 // pred_fallthru
      _
    // Predicated region
    $region45: #{tpu_custom_call.1} parent=1 // pred_check
      _
    $region46: #{tpu_custom_call.1} parent=1 // pred_check_branch
      %131 = sbr.rel (0) target = $region48
    $region47: #{tpu_custom_call.1} parent=1 // pred_region
      _
    $region48: #{tpu_custom_call.1} parent=1 // pred_fallthru
      _
    %132 = vsyncpa [#allocation4], 1
    %133 = vsyncpa [#allocation6], 1

</llo_original>
